<compile_context>
chip_gen: v5e
topology: v5e:2x2
jax: 0.10.0
libtpu: 0.0.40
codegen_flags: <defaults>
</compile_context>

<pallas_src>
import functools

import jax
import jax.numpy as jnp
from jax import lax
from jax.experimental import pallas as pl
from jax.experimental.pallas import tpu as pltpu

EPS = 1e-5
VMEM_LIMIT = 64 * 1024 * 1024   # explicit scoped-VMEM cap; <= physical on v5e/v6e/v7x


def conv_kernel(p_ref, w_ref, y_ref, sum_ref, sq_ref, *, Cout):
    """One (batch, depth-slab) step: 3x3x3 conv as a single lane-dense matmul.

    p_ref : (1, 1, Kp, MB)      bf16 im2col patches (K on sublanes, slab on lanes)
    w_ref : (Cout_r, Kp)        bf16 reshaped conv weights
    y_ref : (1, Cout, MB)       f32 conv-output slab of the global (Cout, DHW) layout
    sum_ref, sq_ref : (1, 1, Cout, 1)  f32 per-step partial moments
    """
    p = p_ref[0, 0]                                           # (Kp, MB) bf16
    w = w_ref[...]                                            # (Cout_r, Kp) bf16
    # bf16 x bf16 -> f32 accumulate; result already in (Cout, M) orientation,
    # so the store below needs no transpose and is lane-dense (MB % 128 == 0).
    acc = jnp.dot(w, p, preferred_element_type=jnp.float32)   # (Cout_r, MB) f32
    acc = acc[:Cout, :]                                       # drop Cout rounding rows
    y_ref[0] = acc

    # Single-pass moments (f32) so BatchNorm statistics stay global.
    # TODO(synk): switch to a centered/Welford accumulation if activations ever
    # get large enough for E[x^2]-E[x]^2 cancellation to matter.
    sum_ref[0, 0] = jnp.sum(acc, axis=1, keepdims=True)       # (Cout, 1)
    sq_ref[0, 0] = jnp.sum(acc * acc, axis=1, keepdims=True)  # (Cout, 1)


def bn_relu_kernel(y_ref, scale_ref, shift_ref, o_ref):
    """Fused affine BatchNorm (precomputed scale/shift) + ReLU, lane-dense."""
    y = y_ref[...]                                            # (1, Cout, MB) f32
    o_ref[...] = jnp.maximum(y * scale_ref[...] + shift_ref[...], 0.0)


def _pick_depth_batch(D, HW):
    # DB*HW must stay a multiple of 128 for unmasked lane-dense stores; prefer
    # DB=4 (fills the 256-wide v6e/v7x MXU), fall back to 2 (v5e-sized) or 1.
    for db in (4, 2, 1):
        if D % db == 0 and (db * HW) % 128 == 0:
            return db
    for db in (4, 2, 1):
        if D % db == 0:
            return db
    return 1


def convolution_forward(x_ncdhw, w_oidhw, bias, gamma, beta, eps=EPS):
    """x_ncdhw: (N, Cin, D, H, W); w_oidhw: (Cout, Cin, 3, 3, 3)."""
    N, Cin, D, H, W = x_ncdhw.shape
    Cout = w_oidhw.shape[0]
    HW = H * W
    DHW = D * HW
    K = 27 * Cin
    Kp = ((K + 127) // 128) * 128             # contraction dim padded to 128
    Cout_r = ((Cout + 7) // 8) * 8            # sublane-align the matmul LHS rows
    DB = _pick_depth_batch(D, HW)             # depth slices per grid step
    S = D // DB
    MB = DB * HW                              # matmul / store slab width (lanes)

    # The Conv3d bias is mathematically cancelled by the training-mode BatchNorm
    # mean subtraction that follows, so it is dropped (dead work).  It must be
    # restored if BN is ever run in eval mode with running statistics.
    del bias

    # --- wrapper glue: im2col into the exact (K, M) layout the kernel wants ---
    # Review option (b): one relayout pass in XLA, zero relayout in-kernel.
    # TODO(synk): for large Cin the 27x patch inflation makes in-kernel im2col
    # from a packed input the better trade; not needed at UNet-head channel counts.
    x = x_ncdhw.astype(jnp.float32)
    xp = jnp.pad(x, ((0, 0), (0, 0), (1, 1), (1, 1), (1, 1)))        # halo pad=1
    taps = [xp[:, :, kd:kd + D, kh:kh + H, kw:kw + W]
            for kd in range(3) for kh in range(3) for kw in range(3)]
    p = jnp.stack(taps, axis=1)                      # (N, 27, Cin, D, H, W)
    p = p.reshape(N, 27, Cin, S, DB, HW)
    p = jnp.transpose(p, (0, 3, 1, 2, 4, 5))         # (N, S, 27, Cin, DB, HW)
    p = p.reshape(N, S, K, MB)                       # k = tap*Cin + c ; m = dd*HW + hw
    p = jnp.pad(p, ((0, 0), (0, 0), (0, Kp - K), (0, 0))).astype(jnp.bfloat16)

    w2 = jnp.transpose(w_oidhw.astype(jnp.float32), (0, 2, 3, 4, 1))
    w2 = w2.reshape(Cout, K)                         # same k = tap*Cin + c ordering
    w2 = jnp.pad(w2, ((0, Cout_r - Cout), (0, Kp - K))).astype(jnp.bfloat16)

    # --- pass 1: conv + per-(n, depth-slab) partial moments --------------------
    kernel1 = functools.partial(conv_kernel, Cout=Cout)
    y, sums, sqs = pl.pallas_call(
        kernel1,
        grid=(N, S),
        in_specs=[
            pl.BlockSpec((1, 1, Kp, MB), lambda n, s: (n, s, 0, 0)),
            pl.BlockSpec((Cout_r, Kp), lambda n, s: (0, 0)),
        ],
        out_specs=[
            pl.BlockSpec((1, Cout, MB), lambda n, s: (n, 0, s)),
            pl.BlockSpec((1, 1, Cout, 1), lambda n, s: (n, s, 0, 0)),
            pl.BlockSpec((1, 1, Cout, 1), lambda n, s: (n, s, 0, 0)),
        ],
        out_shape=[
            jax.ShapeDtypeStruct((N, Cout, DHW), jnp.float32),
            jax.ShapeDtypeStruct((N, S, Cout, 1), jnp.float32),
            jax.ShapeDtypeStruct((N, S, Cout, 1), jnp.float32),
        ],
        compiler_params=pltpu.CompilerParams(
            dimension_semantics=("parallel", "parallel"),
            vmem_limit_bytes=VMEM_LIMIT),
    )(p, w2)

    # --- tiny per-channel reduction + BN scale/shift (wrapper glue) ------------
    count = jnp.float32(N * DHW)
    mean = jnp.sum(sums, axis=(0, 1)) / count         # (Cout, 1)
    ex2 = jnp.sum(sqs, axis=(0, 1)) / count
    var = jnp.maximum(ex2 - mean * mean, 0.0)         # biased batch variance
    scale = gamma.astype(jnp.float32).reshape(Cout, 1) * lax.rsqrt(var + eps)
    shift = beta.astype(jnp.float32).reshape(Cout, 1) - mean * scale
    scale = scale.reshape(1, Cout, 1)
    shift = shift.reshape(1, Cout, 1)

    # --- pass 2: normalize + ReLU, in place on y -------------------------------
    out = pl.pallas_call(
        bn_relu_kernel,
        grid=(N, S),
        in_specs=[
            pl.BlockSpec((1, Cout, MB), lambda n, s: (n, 0, s)),
            pl.BlockSpec((1, Cout, 1), lambda n, s: (0, 0, 0)),
            pl.BlockSpec((1, Cout, 1), lambda n, s: (0, 0, 0)),
        ],
        out_specs=pl.BlockSpec((1, Cout, MB), lambda n, s: (n, 0, s)),
        out_shape=jax.ShapeDtypeStruct((N, Cout, DHW), jnp.float32),
        input_output_aliases={0: 0},                  # write normalized y in place
        compiler_params=pltpu.CompilerParams(
            dimension_semantics=("parallel", "parallel"),
            vmem_limit_bytes=VMEM_LIMIT),
    )(y, scale, shift)

    # Already NCDHW up to a free metadata reshape (no slice, no transpose pass).
    return out.reshape(N, Cout, D, H, W)


if __name__ == "__main__":
    key = jax.random.PRNGKey(0)
    N, Cin, Cout, D, H, W = 2, 4, 8, 8, 8, 8

    k_x, k_w, k_b = jax.random.split(key, 3)
    x = jax.random.normal(k_x, (N, Cin, D, H, W), jnp.float32)

    # Deterministic Conv3d parameter init (uniform, PyTorch-like fan-in bound).
    fan_in = Cin * 3 * 3 * 3
    bound = 1.0 / (fan_in ** 0.5)
    w = jax.random.uniform(k_w, (Cout, Cin, 3, 3, 3), jnp.float32, -bound, bound)
    b = jax.random.uniform(k_b, (Cout,), jnp.float32, -bound, bound)
    gamma = jnp.ones((Cout,), jnp.float32)    # BatchNorm3d weight init
    beta = jnp.zeros((Cout,), jnp.float32)    # BatchNorm3d bias init

    fwd = jax.jit(convolution_forward)
    out = jax.block_until_ready(fwd(x, w, b, gamma, beta))

    # Pure-JAX f32 reference (training-mode BN with biased batch statistics).
    conv_ref = lax.conv_general_dilated(
        x, w, window_strides=(1, 1, 1), padding=[(1, 1)] * 3,
        dimension_numbers=('NCDHW', 'OIDHW', 'NCDHW')) + b.reshape(1, Cout, 1, 1, 1)
    mean = jnp.mean(conv_ref, axis=(0, 2, 3, 4), keepdims=True)
    var = jnp.mean((conv_ref - mean) ** 2, axis=(0, 2, 3, 4), keepdims=True)
    ref = (conv_ref - mean) * lax.rsqrt(var + EPS)
    ref = ref * gamma.reshape(1, Cout, 1, 1, 1) + beta.reshape(1, Cout, 1, 1, 1)
    ref = jnp.maximum(ref, 0.0)

    assert out.shape == (N, Cout, D, H, W)
    # bf16 MXU inputs (f32 accumulate) -> looser tolerance than the pure-f32 path.
    max_err = float(jnp.max(jnp.abs(out - ref)))
    assert max_err < 3e-2, f"mismatch vs JAX reference: max abs err {max_err}"
    print("KERNEL_OK")
</pallas_src>

<mosaic_0001>
module attributes {stable_mosaic.version = 11 : i64} {
  func.func @conv_kernel(%arg0: i32, %arg1: i32, %arg2: memref<1x1x128x256xbf16, #tpu.memory_space<vmem>>, %arg3: memref<8x128xbf16, #tpu.memory_space<vmem>>, %arg4: memref<1x8x256xf32, #tpu.memory_space<vmem>>, %arg5: memref<1x1x8x1xf32, #tpu.memory_space<vmem>>, %arg6: memref<1x1x8x1xf32, #tpu.memory_space<vmem>>) attributes {dimension_semantics = [#tpu.dimension_semantics<parallel>, #tpu.dimension_semantics<parallel>], iteration_bounds = array<i64: 2, 2>, scalar_prefetch = 0 : i64, scratch_operands = 0 : i64, tpu.core_type = #tpu.core_type<tc>, window_params = [{transform_indices = @transform_0, window_bounds = array<i64: 1, 1, 128, 256>}, {pipeline_mode = #tpu.pipeline_mode<synchronous>, transform_indices = @transform_1, window_bounds = array<i64: 8, 128>}, {transform_indices = @transform_2, window_bounds = array<i64: 1, 8, 256>}, {transform_indices = @transform_3, window_bounds = array<i64: 1, 1, 8, 1>}, {transform_indices = @transform_4, window_bounds = array<i64: 1, 1, 8, 1>}]} {
    %c0 = arith.constant 0 : index
    %c0_0 = arith.constant 0 : index
    %c0_1 = arith.constant 0 : index
    %c0_2 = arith.constant 0 : index
    %0 = vector.load %arg2[%c0, %c0_0, %c0_1, %c0_2] : memref<1x1x128x256xbf16, #tpu.memory_space<vmem>>, vector<1x1x128x256xbf16>
    %1 = vector.shape_cast %0 : vector<1x1x128x256xbf16> to vector<128x256xbf16>
    %c0_3 = arith.constant 0 : index
    %c0_4 = arith.constant 0 : index
    %2 = vector.load %arg3[%c0_3, %c0_4] : memref<8x128xbf16, #tpu.memory_space<vmem>>, vector<8x128xbf16>
    %cst = arith.constant dense<0.000000e+00> : vector<8x256xf32>
    %3 = tpu.matmul %2, %1, %cst {dimension_numbers = #tpu.dot_dimension_numbers<[1], [0], [0], [1], [0, 0, 1, 1], [], []>} : vector<8x128xbf16>, vector<128x256xbf16>, vector<8x256xf32> -> vector<8x256xf32>
    %c0_5 = arith.constant 0 : index
    %c0_6 = arith.constant 0 : index
    %c0_7 = arith.constant 0 : index
    %4 = vector.load %arg4[%c0_5, %c0_6, %c0_7] : memref<1x8x256xf32, #tpu.memory_space<vmem>>, vector<1x8x256xf32>
    %5 = vector.shape_cast %4 : vector<1x8x256xf32> to vector<8x256xf32>
    %6 = vector.shape_cast %3 : vector<8x256xf32> to vector<1x8x256xf32>
    tpu.vector_store %arg4[%c0_5, %c0_6, %c0_7], %6 {strides = array<i32>} : memref<1x8x256xf32, #tpu.memory_space<vmem>>, vector<1x8x256xf32>,
    %cst_8 = arith.constant dense<0.000000e+00> : vector<8xf32>
    %7 = vector.multi_reduction <add>, %3, %cst_8 [1] : vector<8x256xf32> to vector<8xf32>
    %8 = vector.shape_cast %7 : vector<8xf32> to vector<8x1xf32>
    %c0_9 = arith.constant 0 : index
    %c0_10 = arith.constant 0 : index
    %c0_11 = arith.constant 0 : index
    %c0_12 = arith.constant 0 : index
    %9 = vector.load %arg5[%c0_9, %c0_10, %c0_11, %c0_12] : memref<1x1x8x1xf32, #tpu.memory_space<vmem>>, vector<1x1x8x1xf32>
    %10 = vector.shape_cast %9 : vector<1x1x8x1xf32> to vector<8x1xf32>
    %11 = vector.shape_cast %8 : vector<8x1xf32> to vector<1x1x8x1xf32>
    tpu.vector_store %arg5[%c0_9, %c0_10, %c0_11, %c0_12], %11 {strides = array<i32>} : memref<1x1x8x1xf32, #tpu.memory_space<vmem>>, vector<1x1x8x1xf32>,
    %12 = arith.mulf %3, %3 : vector<8x256xf32>
    %cst_13 = arith.constant dense<0.000000e+00> : vector<8xf32>
    %13 = vector.multi_reduction <add>, %12, %cst_13 [1] : vector<8x256xf32> to vector<8xf32>
    %14 = vector.shape_cast %13 : vector<8xf32> to vector<8x1xf32>
    %c0_14 = arith.constant 0 : index
    %c0_15 = arith.constant 0 : index
    %c0_16 = arith.constant 0 : index
    %c0_17 = arith.constant 0 : index
    %15 = vector.load %arg6[%c0_14, %c0_15, %c0_16, %c0_17] : memref<1x1x8x1xf32, #tpu.memory_space<vmem>>, vector<1x1x8x1xf32>
    %16 = vector.shape_cast %15 : vector<1x1x8x1xf32> to vector<8x1xf32>
    %17 = vector.shape_cast %14 : vector<8x1xf32> to vector<1x1x8x1xf32>
    tpu.vector_store %arg6[%c0_14, %c0_15, %c0_16, %c0_17], %17 {strides = array<i32>} : memref<1x1x8x1xf32, #tpu.memory_space<vmem>>, vector<1x1x8x1xf32>,
    return
  }
  func.func @transform_0(%arg0: i32, %arg1: i32) -> (i32, i32, i32, i32) {
    %c0_i32 = arith.constant 0 : i32
    %c0_i32_0 = arith.constant 0 : i32
    %c0_i32_1 = arith.constant 0 : i32
    return %arg0, %arg1, %c0_i32, %c0_i32_0 : i32, i32, i32, i32
  }
  func.func @transform_1(%arg0: i32, %arg1: i32) -> (i32, i32) {
    %c0_i32 = arith.constant 0 : i32
    %c0_i32_0 = arith.constant 0 : i32
    %c0_i32_1 = arith.constant 0 : i32
    return %c0_i32, %c0_i32_0 : i32, i32
  }
  func.func @transform_2(%arg0: i32, %arg1: i32) -> (i32, i32, i32) {
    %c0_i32 = arith.constant 0 : i32
    %c0_i32_0 = arith.constant 0 : i32
    return %arg0, %c0_i32, %arg1 : i32, i32, i32
  }
  func.func @transform_3(%arg0: i32, %arg1: i32) -> (i32, i32, i32, i32) {
    %c0_i32 = arith.constant 0 : i32
    %c0_i32_0 = arith.constant 0 : i32
    %c0_i32_1 = arith.constant 0 : i32
    return %arg0, %arg1, %c0_i32, %c0_i32_0 : i32, i32, i32, i32
  }
  func.func @transform_4(%arg0: i32, %arg1: i32) -> (i32, i32, i32, i32) {
    %c0_i32 = arith.constant 0 : i32
    %c0_i32_0 = arith.constant 0 : i32
    %c0_i32_1 = arith.constant 0 : i32
    return %arg0, %arg1, %c0_i32, %c0_i32_0 : i32, i32, i32, i32
  }
}

module attributes {stable_mosaic.version = 11 : i64} {
  func.func @bn_relu_kernel(%arg0: i32, %arg1: i32, %arg2: memref<1x8x256xf32, #tpu.memory_space<vmem>>, %arg3: memref<1x8x1xf32, #tpu.memory_space<vmem>>, %arg4: memref<1x8x1xf32, #tpu.memory_space<vmem>>, %arg5: memref<1x8x256xf32, #tpu.memory_space<vmem>>) attributes {dimension_semantics = [#tpu.dimension_semantics<parallel>, #tpu.dimension_semantics<parallel>], iteration_bounds = array<i64: 2, 2>, scalar_prefetch = 0 : i64, scratch_operands = 0 : i64, tpu.core_type = #tpu.core_type<tc>, window_params = [{transform_indices = @transform_0, window_bounds = array<i64: 1, 8, 256>}, {pipeline_mode = #tpu.pipeline_mode<synchronous>, transform_indices = @transform_1, window_bounds = array<i64: 1, 8, 1>}, {pipeline_mode = #tpu.pipeline_mode<synchronous>, transform_indices = @transform_2, window_bounds = array<i64: 1, 8, 1>}, {transform_indices = @transform_3, window_bounds = array<i64: 1, 8, 256>}]} {
    %c0 = arith.constant 0 : index
    %c0_0 = arith.constant 0 : index
    %c0_1 = arith.constant 0 : index
    %0 = vector.load %arg2[%c0, %c0_0, %c0_1] : memref<1x8x256xf32, #tpu.memory_space<vmem>>, vector<1x8x256xf32>
    %c0_2 = arith.constant 0 : index
    %c0_3 = arith.constant 0 : index
    %c0_4 = arith.constant 0 : index
    %1 = vector.load %arg3[%c0_2, %c0_3, %c0_4] : memref<1x8x1xf32, #tpu.memory_space<vmem>>, vector<1x8x1xf32>
    %2 = vector.broadcast %1 : vector<1x8x1xf32> to vector<1x8x256xf32>
    %3 = arith.mulf %0, %2 : vector<1x8x256xf32>
    %c0_5 = arith.constant 0 : index
    %c0_6 = arith.constant 0 : index
    %c0_7 = arith.constant 0 : index
    %4 = vector.load %arg4[%c0_5, %c0_6, %c0_7] : memref<1x8x1xf32, #tpu.memory_space<vmem>>, vector<1x8x1xf32>
    %5 = vector.broadcast %4 : vector<1x8x1xf32> to vector<1x8x256xf32>
    %6 = arith.addf %3, %5 : vector<1x8x256xf32>
    %cst = arith.constant 0.000000e+00 : f32
    %7 = vector.broadcast %cst : f32 to vector<1x8x256xf32>
    %8 = arith.maximumf %6, %7 : vector<1x8x256xf32>
    %c0_8 = arith.constant 0 : index
    %c0_9 = arith.constant 0 : index
    %c0_10 = arith.constant 0 : index
    %9 = vector.load %arg5[%c0_8, %c0_9, %c0_10] : memref<1x8x256xf32, #tpu.memory_space<vmem>>, vector<1x8x256xf32>
    tpu.vector_store %arg5[%c0_8, %c0_9, %c0_10], %8 {strides = array<i32>} : memref<1x8x256xf32, #tpu.memory_space<vmem>>, vector<1x8x256xf32>,
    return
  }
  func.func @transform_0(%arg0: i32, %arg1: i32) -> (i32, i32, i32) {
    %c0_i32 = arith.constant 0 : i32
    %c0_i32_0 = arith.constant 0 : i32
    return %arg0, %c0_i32, %arg1 : i32, i32, i32
  }
  func.func @transform_1(%arg0: i32, %arg1: i32) -> (i32, i32, i32) {
    %c0_i32 = arith.constant 0 : i32
    %c0_i32_0 = arith.constant 0 : i32
    %c0_i32_1 = arith.constant 0 : i32
    %c0_i32_2 = arith.constant 0 : i32
    return %c0_i32, %c0_i32_0, %c0_i32_1 : i32, i32, i32
  }
  func.func @transform_2(%arg0: i32, %arg1: i32) -> (i32, i32, i32) {
    %c0_i32 = arith.constant 0 : i32
    %c0_i32_0 = arith.constant 0 : i32
    %c0_i32_1 = arith.constant 0 : i32
    %c0_i32_2 = arith.constant 0 : i32
    return %c0_i32, %c0_i32_0, %c0_i32_1 : i32, i32, i32
  }
  func.func @transform_3(%arg0: i32, %arg1: i32) -> (i32, i32, i32) {
    %c0_i32 = arith.constant 0 : i32
    %c0_i32_0 = arith.constant 0 : i32
    return %arg0, %c0_i32, %arg1 : i32, i32, i32
  }
}

</mosaic_0001>

<llo_original>
// kernel: convolution_forward.3
$region0: #{convolution_forward.3}
  #allocation0 [shape = 'u32[]', space=smem, size = 0x4, offset = 0x4, fixed_abs, tag = 'smem constant byte address 0x4 - core index']
  #allocation1 [shape = 'u32[72,128]{1,0:T(1,128)}', space=vmem, size = 0x9000, scoped, tag = 'internal scratch']
  %s0 = inlined_call_operand.vmem [shape: f32[2,8,512], index: 0, kind: input, shape index: {}, may-alias: {0,3}]
  %s1 = inlined_call_operand.vmem [shape: f32[1,8,1], index: 1, kind: input, shape index: {}]
  %s2 = inlined_call_operand.vmem [shape: f32[1,8,1], index: 2, kind: input, shape index: {}]
  %s3 = inlined_call_operand.vmem [shape: f32[2,8,512], index: 3, kind: output, shape index: {}, may-alias: {0,3}]
  %s4 = sld [smem:[#allocation0]]
  $region45: #{convolution_forward.3} parent=0
    _
  %s6 = ssub.s32 1, %s4
  %s7 = scalar_select 0, %s6, %s4
  loop: start=0, step=1, limit=6
  $region2: #{convolution_forward.3} parent=0 // loop_pre_header
    _
  $region3: #{convolution_forward.3} parent=0 // loop_header
    %s9 = sphi 0, %s13
    %p10 = scmp.ge.s32.totalorder %s9, 6
    %s16 = sphi 0, %s28
    %s17 = sphi 0, %s24
    %s18 = sphi 0, %s16
    %s19 = sphi 0, %s17
    %s20 = sphi 0, %s18
    %s21 = sphi 0, %s19
    %s33 = sphi 0, %s35
    %s36 = sphi 0, %s33
    %s37 = sphi 0, %s36
    %s53 = sphi 0, %s37
    %s57 = sphi 0, %s57
    %s59 = sphi 0, %s57
    %s60 = sphi 0, %s59
    %s74 = sphi 0, %s60
    %s78 = sphi 0, %s78
    %s80 = sphi 0, %s78
    %s81 = sphi 0, %s80
    %s95 = sphi 0, %s81
    %s103 = sphi 0, %s105
    %s106 = sphi 0, %s103
    %s107 = sphi 0, %s106
    %s123 = sphi 0, %s107
  $region4: #{convolution_forward.3} parent=0 // loop_header_branch
    %12 = sbr.rel (%p10) target = $region8
  $region5: #{convolution_forward.3} parent=0 // loop_body
    %s14 = ssub.s32 %s9, 1
    %s15 = ssub.s32 %s9, 2
    %s22 = sadd.s32 1, %s17
    %p23 = scmp.ge.s32.totalorder %s22, 2
    %s24 = scalar_select %p23, 0, %s22
    %s25 = sadd.s32 1, %s16
    %s26 = scalar_select %p23, %s25, %s16
    %p27 = scmp.ge.s32.totalorder %s26, 2
    %s28 = scalar_select %p27, 0, %s26
    %s29 = ssub.s32 %s16, %s28
    %s30 = ssub.s32 %s17, %s24
    %s31 = sor.u32 %s29, %s30
    %p32 = scmp.eq.s32.totalorder %s31, 0
    %s34 = sadd.s32 %s33, 1
    %s35 = scalar_select %p32, %s33, %s34
    %p38 = pneg %p32
    %p39 = scmp.eq.s32.totalorder %s9, 3
    %p40 = por %p38, %p39
    %p41 = scmp.ne.s32.totalorder %s33, %s36
    %p42 = scmp.eq.s32.totalorder %s9, 0
    %p43 = por %p41, %p42
    %p44 = scmp.ne.s32.totalorder %s33, %s36
    %p45 = scmp.eq.s32.totalorder %s14, 3
    %p46 = por %p44, %p45
    %p47 = scmp.ne.s32.totalorder %s36, %s37
    %p48 = scmp.eq.s32.totalorder %s14, 0
    %p49 = por %p47, %p48
    %p50 = scmp.ne.s32.totalorder %s36, %s37
    %p51 = scmp.eq.s32.totalorder %s15, 3
    %p52 = por %p50, %p51
    %p54 = scmp.ne.s32.totalorder %s37, %s53
    %p55 = scmp.eq.s32.totalorder %s15, 0
    %p56 = por %p54, %p55
    %s58 = sadd.s32 %s57, 1
    %p61 = scmp.eq.s32.totalorder %s9, 3
    %p62 = scmp.ne.s32.totalorder %s57, %s59
    %p63 = scmp.eq.s32.totalorder %s9, 0
    %p64 = por %p62, %p63
    %p65 = scmp.ne.s32.totalorder %s57, %s59
    %p66 = scmp.eq.s32.totalorder %s14, 3
    %p67 = por %p65, %p66
    %p68 = scmp.ne.s32.totalorder %s59, %s60
    %p69 = scmp.eq.s32.totalorder %s14, 0
    %p70 = por %p68, %p69
    %p71 = scmp.ne.s32.totalorder %s59, %s60
    %p72 = scmp.eq.s32.totalorder %s15, 3
    %p73 = por %p71, %p72
    %p75 = scmp.ne.s32.totalorder %s60, %s74
    %p76 = scmp.eq.s32.totalorder %s15, 0
    %p77 = por %p75, %p76
    %s79 = sadd.s32 %s78, 1
    %p82 = scmp.eq.s32.totalorder %s9, 3
    %p83 = scmp.ne.s32.totalorder %s78, %s80
    %p84 = scmp.eq.s32.totalorder %s9, 0
    %p85 = por %p83, %p84
    %p86 = scmp.ne.s32.totalorder %s78, %s80
    %p87 = scmp.eq.s32.totalorder %s14, 3
    %p88 = por %p86, %p87
    %p89 = scmp.ne.s32.totalorder %s80, %s81
    %p90 = scmp.eq.s32.totalorder %s14, 0
    %p91 = por %p89, %p90
    %p92 = scmp.ne.s32.totalorder %s80, %s81
    %p93 = scmp.eq.s32.totalorder %s15, 3
    %p94 = por %p92, %p93
    %p96 = scmp.ne.s32.totalorder %s81, %s95
    %p97 = scmp.eq.s32.totalorder %s15, 0
    %p98 = por %p96, %p97
    %s99 = ssub.s32 %s16, %s28
    %s100 = ssub.s32 %s17, %s24
    %s101 = sor.u32 %s99, %s100
    %p102 = scmp.eq.s32.totalorder %s101, 0
    %s104 = sadd.s32 %s103, 1
    %s105 = scalar_select %p102, %s103, %s104
    %p108 = pneg %p102
    %p109 = scmp.eq.s32.totalorder %s9, 3
    %p110 = por %p108, %p109
    %p111 = scmp.ne.s32.totalorder %s103, %s106
    %p112 = scmp.eq.s32.totalorder %s9, 0
    %p113 = por %p111, %p112
    %p114 = scmp.ne.s32.totalorder %s103, %s106
    %p115 = scmp.eq.s32.totalorder %s14, 3
    %p116 = por %p114, %p115
    %p117 = scmp.ne.s32.totalorder %s106, %s107
    %p118 = scmp.eq.s32.totalorder %s14, 0
    %p119 = por %p117, %p118
    %p120 = scmp.ne.s32.totalorder %s106, %s107
    %p121 = scmp.eq.s32.totalorder %s15, 3
    %p122 = por %p120, %p121
    %p124 = scmp.ne.s32.totalorder %s107, %s123
    %p125 = scmp.eq.s32.totalorder %s15, 0
    %p126 = por %p124, %p125
    %p127 = scmp.le.s32.totalorder 1, %s9
    %p128 = scmp.lt.s32.totalorder %s9, 5
    %p129 = pnand %p127, %p128
    %p130 = pneg %p129
    // Predicated region
    $region9: #{convolution_forward.3} parent=5 // pred_check
      _
    $region10: #{convolution_forward.3} parent=5 // pred_check_branch
      %132 = sbr.rel (%p129) target = $region12
    $region11: #{convolution_forward.3} parent=5 // pred_region
      %s133 = ssub.s32 %s9, 1
      // Predicated region
      $region13: #{convolution_forward.3} parent=11 // pred_check
        %p134 = pneg %p70
      $region14: #{convolution_forward.3} parent=11 // pred_check_branch
        %136 = sbr.rel (%p134) target = $region16
      $region15: #{convolution_forward.3} parent=11 // pred_region
        _
      $region16: #{convolution_forward.3} parent=11 // pred_fallthru
        _
      // Predicated region
      $region17: #{convolution_forward.3} parent=11 // pred_check
        %p137 = pneg %p91
      $region18: #{convolution_forward.3} parent=11 // pred_check_branch
        %139 = sbr.rel (%p137) target = $region20
      $region19: #{convolution_forward.3} parent=11 // pred_region
        _
      $region20: #{convolution_forward.3} parent=11 // pred_fallthru
        _
    $region12: #{convolution_forward.3} parent=5 // pred_fallthru
      _
    %p140 = scmp.lt.s32.totalorder %s9, 4
    // Predicated region
    $region21: #{convolution_forward.3} parent=5 // pred_check
      %p141 = pneg %p140
    $region22: #{convolution_forward.3} parent=5 // pred_check_branch
      %143 = sbr.rel (%p141) target = $region24
    $region23: #{convolution_forward.3} parent=5 // pred_region
      // Predicated region
      $region25: #{convolution_forward.3} parent=23 // pred_check
        %p144 = pneg %p43
      $region26: #{convolution_forward.3} parent=23 // pred_check_branch
        %146 = sbr.rel (%p144) target = $region28
      $region27: #{convolution_forward.3} parent=23 // pred_region
        %s147 = smul.u32 2, %s17
        %p148 = scmp.lt.s32.totalorder %s16, 1
        %s149 = scalar_select %p148, %s16, 1
        %p150 = scmp.lt.s32.totalorder %s147, 3
        %s151 = scalar_select %p150, %s147, 3
        %s152 = smul.addr %s149, 4
        %s153 = sadd.s32 %s151, %s152
        %s154 = smul.addr %s153, 8
        %s155 = scalar_lea.vmem %s0, %s154
        %s156 = smul.u32 2, %s17
      $region28: #{convolution_forward.3} parent=23 // pred_fallthru
        _
    $region24: #{convolution_forward.3} parent=5 // pred_fallthru
      _
    %p157 = scmp.le.s32.totalorder 1, %s9
    %p158 = scmp.lt.s32.totalorder %s9, 5
    %p159 = pnand %p157, %p158
    %p160 = pneg %p159
    // Predicated region
    $region29: #{convolution_forward.3} parent=5 // pred_check
      _
    $region30: #{convolution_forward.3} parent=5 // pred_check_branch
      %162 = sbr.rel (%p159) target = $region32
    $region31: #{convolution_forward.3} parent=5 // pred_region
      %s163 = ssub.s32 %s9, 1
      %s164 = smul.u32 2, %s19
      %p165 = scmp.lt.s32.totalorder %s18, 1
      %s166 = scalar_select %p165, %s18, 1
      %p167 = scmp.lt.s32.totalorder %s164, 3
      %s168 = scalar_select %p167, %s164, 3
      %s169 = smul.addr %s166, 4
      %s170 = sadd.s32 %s168, %s169
      %s171 = smul.addr %s170, 8
      %s172 = scalar_lea.vmem %s0, %s171
      %p173 = pneg %p49
      %p174 = pneg %p46
      %p175 = pneg %p70
      %p176 = pneg %p67
      %p177 = pneg %p91
      %p178 = pneg %p88
      %p179 = pneg %p119
      %p180 = pneg %p116
      %s181 = smul.u32 2, %s19
      %p182 = scmp.lt.s32.totalorder %s18, 1
      %s183 = scalar_select %p182, %s18, 1
      %p184 = scmp.lt.s32.totalorder %s181, 3
      %s185 = scalar_select %p184, %s181, 3
      %s186 = smul.addr %s183, 4
      %s187 = sadd.s32 %s185, %s186
      %s188 = smul.addr %s187, 8
      %s189 = scalar_lea.vmem %s3, %s188
      %s190 = smul.u32 2, %s19
      %p191 = scmp.lt.s32.totalorder %s18, 1
      %s192 = scalar_select %p191, %s18, 1
      %p193 = scmp.lt.s32.totalorder %s190, 3
      %s194 = scalar_select %p193, %s190, 3
      %s195 = smul.addr %s192, 4
      %s196 = sadd.s32 %s194, %s195
      %s197 = smul.addr %s196, 8
      %s198 = scalar_lea.vmem %s0, %s197
      %s199 = smul.u32 2, %s19
      %s200 = smul.u32 2, %s19
      %p201 = scmp.lt.s32.totalorder %s18, 1
      %s202 = scalar_select %p201, %s18, 1
      %p203 = scmp.lt.s32.totalorder %s200, 3
      %s204 = scalar_select %p203, %s200, 3
      %s205 = smul.addr %s202, 4
      %s206 = sadd.s32 %s204, %s205
      %s207 = smul.addr %s206, 8
      %s208 = scalar_lea.vmem %s3, %s207
      %s209 = smul.u32 2, %s19
      %v210 = vld [vmem:[%s198] sm:$0xff]
      %v211 = vld [vmem:[%s198 + $0x8] sm:$0xff]
      %v212 = vld [vmem:[%s1] sm:$0xff]
      %214 = vset.pattern.permute.xlu0 0
      %215 = vperm.xlu0 %214, %v212
      %v216 = vpop.permute.xlu0 %215
      %v218 = vmul.f32 %v210, %v216
      %v219 = vmul.f32 %v211, %v216
      %v220 = vld [vmem:[%s2] sm:$0xff]
      %222 = vset.pattern.permute.xlu0 0
      %223 = vperm.xlu0 %222, %v220
      %v224 = vpop.permute.xlu0 %223
      %v226 = vadd.f32 %v218, %v224
      %v227 = vadd.f32 %v219, %v224
      %v228 = vmax.f32 %v226, 0.0
      %v229 = vmax.f32 %v227, 0.0
      %230 = vst [vmem:[%s208] sm:$0xff] %v228
      %231 = vst [vmem:[%s208 + $0x8] sm:$0xff] %v229
      %s232 = smul.u32 2, %s19
      %p233 = scmp.lt.s32.totalorder %s18, 1
      %s234 = scalar_select %p233, %s18, 1
      %p235 = scmp.lt.s32.totalorder %s232, 3
      %s236 = scalar_select %p235, %s232, 3
      %s237 = smul.addr %s234, 4
      %s238 = sadd.s32 %s236, %s237
      %s239 = smul.addr %s238, 8
      %s240 = scalar_lea.vmem %s3, %s239
      // Predicated region
      $region33: #{convolution_forward.3} parent=31 // pred_check
        %p241 = pneg %p116
      $region34: #{convolution_forward.3} parent=31 // pred_check_branch
        %243 = sbr.rel (%p241) target = $region36
      $region35: #{convolution_forward.3} parent=31 // pred_region
        %s244 = smul.u32 2, %s19
      $region36: #{convolution_forward.3} parent=31 // pred_fallthru
        _
    $region32: #{convolution_forward.3} parent=5 // pred_fallthru
      _
    %p245 = scmp.le.s32.totalorder 2, %s9
    // Predicated region
    $region37: #{convolution_forward.3} parent=5 // pred_check
      %p246 = pneg %p245
    $region38: #{convolution_forward.3} parent=5 // pred_check_branch
      %248 = sbr.rel (%p246) target = $region40
    $region39: #{convolution_forward.3} parent=5 // pred_region
      %s249 = ssub.s32 %s9, 2
      // Predicated region
      $region41: #{convolution_forward.3} parent=39 // pred_check
        %p250 = pneg %p122
      $region42: #{convolution_forward.3} parent=39 // pred_check_branch
        %252 = sbr.rel (%p250) target = $region44
      $region43: #{convolution_forward.3} parent=39 // pred_region
        %s253 = smul.u32 2, %s21
        %p254 = scmp.lt.s32.totalorder %s20, 1
        %s255 = scalar_select %p254, %s20, 1
        %p256 = scmp.lt.s32.totalorder %s253, 3
        %s257 = scalar_select %p256, %s253, 3
        %s258 = smul.addr %s255, 4
        %s259 = sadd.s32 %s257, %s258
        %s260 = smul.addr %s259, 8
        %s261 = scalar_lea.vmem %s3, %s260
      $region44: #{convolution_forward.3} parent=39 // pred_fallthru
        _
    $region40: #{convolution_forward.3} parent=5 // pred_fallthru
      _
  $region6: #{convolution_forward.3} parent=0 // loop_footer
    %s13 = sadd.s32 1, %s9
  $region7: #{convolution_forward.3} parent=0 // loop_footer_branch
    %8 = sbr.rel target = $region3
  $region8: #{convolution_forward.3} parent=0 // loop_exit
    _

// kernel: convolution_forward.2
$region0: #{convolution_forward.2}
  #allocation0 [shape = 'u32[]', space=smem, size = 0x4, offset = 0x4, fixed_abs, tag = 'smem constant byte address 0x4 - core index']
  #allocation1 [shape = 'u32[72,128]{1,0:T(1,128)}', space=vmem, size = 0x9000, scoped, tag = 'internal scratch']
  %s0 = inlined_call_operand.vmem [shape: bf16[2,2,128,256], index: 0, kind: input, shape index: {}]
  %s1 = inlined_call_operand.vmem [shape: bf16[8,128], index: 1, kind: input, shape index: {}]
  %s2 = inlined_call_operand.vmem [shape: f32[2,8,512], index: 2, kind: output, shape index: {0}]
  %s3 = inlined_call_operand.vmem [shape: f32[2,2,8,1], index: 3, kind: output, shape index: {1}]
  %s4 = inlined_call_operand.vmem [shape: f32[2,2,8,1], index: 4, kind: output, shape index: {2}]
  %5 = xla_tuple %s2, %s3, %s4
  %s6 = sld [smem:[#allocation0]]
  $region57: #{convolution_forward.2} parent=0
    _
  %s8 = ssub.s32 1, %s6
  %s9 = scalar_select 0, %s8, %s6
  loop: start=0, step=1, limit=6
  $region2: #{convolution_forward.2} parent=0 // loop_pre_header
    _
  $region3: #{convolution_forward.2} parent=0 // loop_header
    %s11 = sphi 0, %s15
    %p12 = scmp.ge.s32.totalorder %s11, 6
    %s18 = sphi 0, %s30
    %s19 = sphi 0, %s26
    %s20 = sphi 0, %s18
    %s21 = sphi 0, %s19
    %s22 = sphi 0, %s20
    %s23 = sphi 0, %s21
    %s35 = sphi 0, %s37
    %s38 = sphi 0, %s35
    %s39 = sphi 0, %s38
    %s55 = sphi 0, %s39
    %s59 = sphi 0, %s59
    %s61 = sphi 0, %s59
    %s62 = sphi 0, %s61
    %s76 = sphi 0, %s62
    %s84 = sphi 0, %s86
    %s87 = sphi 0, %s84
    %s88 = sphi 0, %s87
    %s104 = sphi 0, %s88
    %s112 = sphi 0, %s114
    %s115 = sphi 0, %s112
    %s116 = sphi 0, %s115
    %s132 = sphi 0, %s116
    %s140 = sphi 0, %s142
    %s143 = sphi 0, %s140
    %s144 = sphi 0, %s143
    %s160 = sphi 0, %s144
  $region4: #{convolution_forward.2} parent=0 // loop_header_branch
    %14 = sbr.rel (%p12) target = $region8
  $region5: #{convolution_forward.2} parent=0 // loop_body
    %s16 = ssub.s32 %s11, 1
    %s17 = ssub.s32 %s11, 2
    %s24 = sadd.s32 1, %s19
    %p25 = scmp.ge.s32.totalorder %s24, 2
    %s26 = scalar_select %p25, 0, %s24
    %s27 = sadd.s32 1, %s18
    %s28 = scalar_select %p25, %s27, %s18
    %p29 = scmp.ge.s32.totalorder %s28, 2
    %s30 = scalar_select %p29, 0, %s28
    %s31 = ssub.s32 %s18, %s30
    %s32 = ssub.s32 %s19, %s26
    %s33 = sor.u32 %s31, %s32
    %p34 = scmp.eq.s32.totalorder %s33, 0
    %s36 = sadd.s32 %s35, 1
    %s37 = scalar_select %p34, %s35, %s36
    %p40 = pneg %p34
    %p41 = scmp.eq.s32.totalorder %s11, 3
    %p42 = por %p40, %p41
    %p43 = scmp.ne.s32.totalorder %s35, %s38
    %p44 = scmp.eq.s32.totalorder %s11, 0
    %p45 = por %p43, %p44
    %p46 = scmp.ne.s32.totalorder %s35, %s38
    %p47 = scmp.eq.s32.totalorder %s16, 3
    %p48 = por %p46, %p47
    %p49 = scmp.ne.s32.totalorder %s38, %s39
    %p50 = scmp.eq.s32.totalorder %s16, 0
    %p51 = por %p49, %p50
    %p52 = scmp.ne.s32.totalorder %s38, %s39
    %p53 = scmp.eq.s32.totalorder %s17, 3
    %p54 = por %p52, %p53
    %p56 = scmp.ne.s32.totalorder %s39, %s55
    %p57 = scmp.eq.s32.totalorder %s17, 0
    %p58 = por %p56, %p57
    %s60 = sadd.s32 %s59, 1
    %p63 = scmp.eq.s32.totalorder %s11, 3
    %p64 = scmp.ne.s32.totalorder %s59, %s61
    %p65 = scmp.eq.s32.totalorder %s11, 0
    %p66 = por %p64, %p65
    %p67 = scmp.ne.s32.totalorder %s59, %s61
    %p68 = scmp.eq.s32.totalorder %s16, 3
    %p69 = por %p67, %p68
    %p70 = scmp.ne.s32.totalorder %s61, %s62
    %p71 = scmp.eq.s32.totalorder %s16, 0
    %p72 = por %p70, %p71
    %p73 = scmp.ne.s32.totalorder %s61, %s62
    %p74 = scmp.eq.s32.totalorder %s17, 3
    %p75 = por %p73, %p74
    %p77 = scmp.ne.s32.totalorder %s62, %s76
    %p78 = scmp.eq.s32.totalorder %s17, 0
    %p79 = por %p77, %p78
    %s80 = ssub.s32 %s18, %s30
    %s81 = ssub.s32 %s19, %s26
    %s82 = sor.u32 %s80, %s81
    %p83 = scmp.eq.s32.totalorder %s82, 0
    %s85 = sadd.s32 %s84, 1
    %s86 = scalar_select %p83, %s84, %s85
    %p89 = pneg %p83
    %p90 = scmp.eq.s32.totalorder %s11, 3
    %p91 = por %p89, %p90
    %p92 = scmp.ne.s32.totalorder %s84, %s87
    %p93 = scmp.eq.s32.totalorder %s11, 0
    %p94 = por %p92, %p93
    %p95 = scmp.ne.s32.totalorder %s84, %s87
    %p96 = scmp.eq.s32.totalorder %s16, 3
    %p97 = por %p95, %p96
    %p98 = scmp.ne.s32.totalorder %s87, %s88
    %p99 = scmp.eq.s32.totalorder %s16, 0
    %p100 = por %p98, %p99
    %p101 = scmp.ne.s32.totalorder %s87, %s88
    %p102 = scmp.eq.s32.totalorder %s17, 3
    %p103 = por %p101, %p102
    %p105 = scmp.ne.s32.totalorder %s88, %s104
    %p106 = scmp.eq.s32.totalorder %s17, 0
    %p107 = por %p105, %p106
    %s108 = ssub.s32 %s18, %s30
    %s109 = ssub.s32 %s19, %s26
    %s110 = sor.u32 %s108, %s109
    %p111 = scmp.eq.s32.totalorder %s110, 0
    %s113 = sadd.s32 %s112, 1
    %s114 = scalar_select %p111, %s112, %s113
    %p117 = pneg %p111
    %p118 = scmp.eq.s32.totalorder %s11, 3
    %p119 = por %p117, %p118
    %p120 = scmp.ne.s32.totalorder %s112, %s115
    %p121 = scmp.eq.s32.totalorder %s11, 0
    %p122 = por %p120, %p121
    %p123 = scmp.ne.s32.totalorder %s112, %s115
    %p124 = scmp.eq.s32.totalorder %s16, 3
    %p125 = por %p123, %p124
    %p126 = scmp.ne.s32.totalorder %s115, %s116
    %p127 = scmp.eq.s32.totalorder %s16, 0
    %p128 = por %p126, %p127
    %p129 = scmp.ne.s32.totalorder %s115, %s116
    %p130 = scmp.eq.s32.totalorder %s17, 3
    %p131 = por %p129, %p130
    %p133 = scmp.ne.s32.totalorder %s116, %s132
    %p134 = scmp.eq.s32.totalorder %s17, 0
    %p135 = por %p133, %p134
    %s136 = ssub.s32 %s18, %s30
    %s137 = ssub.s32 %s19, %s26
    %s138 = sor.u32 %s136, %s137
    %p139 = scmp.eq.s32.totalorder %s138, 0
    %s141 = sadd.s32 %s140, 1
    %s142 = scalar_select %p139, %s140, %s141
    %p145 = pneg %p139
    %p146 = scmp.eq.s32.totalorder %s11, 3
    %p147 = por %p145, %p146
    %p148 = scmp.ne.s32.totalorder %s140, %s143
    %p149 = scmp.eq.s32.totalorder %s11, 0
    %p150 = por %p148, %p149
    %p151 = scmp.ne.s32.totalorder %s140, %s143
    %p152 = scmp.eq.s32.totalorder %s16, 3
    %p153 = por %p151, %p152
    %p154 = scmp.ne.s32.totalorder %s143, %s144
    %p155 = scmp.eq.s32.totalorder %s16, 0
    %p156 = por %p154, %p155
    %p157 = scmp.ne.s32.totalorder %s143, %s144
    %p158 = scmp.eq.s32.totalorder %s17, 3
    %p159 = por %p157, %p158
    %p161 = scmp.ne.s32.totalorder %s144, %s160
    %p162 = scmp.eq.s32.totalorder %s17, 0
    %p163 = por %p161, %p162
    %p164 = scmp.le.s32.totalorder 1, %s11
    %p165 = scmp.lt.s32.totalorder %s11, 5
    %p166 = pnand %p164, %p165
    %p167 = pneg %p166
    // Predicated region
    $region9: #{convolution_forward.2} parent=5 // pred_check
      _
    $region10: #{convolution_forward.2} parent=5 // pred_check_branch
      %169 = sbr.rel (%p166) target = $region12
    $region11: #{convolution_forward.2} parent=5 // pred_region
      %s170 = ssub.s32 %s11, 1
      // Predicated region
      $region13: #{convolution_forward.2} parent=11 // pred_check
        %p171 = pneg %p72
      $region14: #{convolution_forward.2} parent=11 // pred_check_branch
        %173 = sbr.rel (%p171) target = $region16
      $region15: #{convolution_forward.2} parent=11 // pred_region
        _
      $region16: #{convolution_forward.2} parent=11 // pred_fallthru
        _
    $region12: #{convolution_forward.2} parent=5 // pred_fallthru
      _
    %p174 = scmp.lt.s32.totalorder %s11, 4
    // Predicated region
    $region17: #{convolution_forward.2} parent=5 // pred_check
      %p175 = pneg %p174
    $region18: #{convolution_forward.2} parent=5 // pred_check_branch
      %177 = sbr.rel (%p175) target = $region20
    $region19: #{convolution_forward.2} parent=5 // pred_region
      // Predicated region
      $region21: #{convolution_forward.2} parent=19 // pred_check
        %p178 = pneg %p45
      $region22: #{convolution_forward.2} parent=19 // pred_check_branch
        %180 = sbr.rel (%p178) target = $region24
      $region23: #{convolution_forward.2} parent=19 // pred_region
        %p181 = scmp.lt.s32.totalorder %s18, 1
        %s182 = scalar_select %p181, %s18, 1
        %p183 = scmp.lt.s32.totalorder %s19, 1
        %s184 = scalar_select %p183, %s19, 1
        %s185 = smul.addr %s184, 32
        %s186 = smul.addr %s182, 64
        %s187 = sadd.s32 %s185, %s186
        %s188 = smul.addr %s187, 4
        %s189 = scalar_lea.vmem %s0, %s188
      $region24: #{convolution_forward.2} parent=19 // pred_fallthru
        _
    $region20: #{convolution_forward.2} parent=5 // pred_fallthru
      _
    %p190 = scmp.le.s32.totalorder 1, %s11
    %p191 = scmp.lt.s32.totalorder %s11, 5
    %p192 = pnand %p190, %p191
    %p193 = pneg %p192
    // Predicated region
    $region25: #{convolution_forward.2} parent=5 // pred_check
      _
    $region26: #{convolution_forward.2} parent=5 // pred_check_branch
      %195 = sbr.rel (%p192) target = $region28
    $region27: #{convolution_forward.2} parent=5 // pred_region
      %s196 = ssub.s32 %s11, 1
      %p197 = scmp.lt.s32.totalorder %s20, 1
      %s198 = scalar_select %p197, %s20, 1
      %p199 = scmp.lt.s32.totalorder %s21, 1
      %s200 = scalar_select %p199, %s21, 1
      %s201 = smul.addr %s200, 32
      %s202 = smul.addr %s198, 64
      %s203 = sadd.s32 %s201, %s202
      %s204 = smul.addr %s203, 4
      %s205 = scalar_lea.vmem %s0, %s204
      %p206 = pneg %p51
      %p207 = pneg %p48
      %p208 = pneg %p72
      %p209 = pneg %p69
      %p210 = pneg %p100
      %p211 = pneg %p97
      %s212 = smul.u32 2, %s21
      %p213 = scmp.lt.s32.totalorder %s20, 1
      %s214 = scalar_select %p213, %s20, 1
      %p215 = scmp.lt.s32.totalorder %s212, 3
      %s216 = scalar_select %p215, %s212, 3
      %s217 = smul.addr %s214, 4
      %s218 = sadd.s32 %s216, %s217
      %s219 = smul.addr %s218, 8
      %s220 = scalar_lea.vmem %s2, %s219
      %p221 = pneg %p128
      %p222 = pneg %p125
      %p223 = scmp.lt.s32.totalorder %s20, 1
      %s224 = scalar_select %p223, %s20, 1
      %p225 = scmp.lt.s32.totalorder %s21, 1
      %s226 = scalar_select %p225, %s21, 1
      %s227 = smul.addr %s224, 2
      %s228 = sadd.s32 %s226, %s227
      %s229 = smul.addr %s228, 8
      %s230 = scalar_lea.vmem %s3, %s229
      %p231 = pneg %p156
      %p232 = pneg %p153
      %p233 = scmp.lt.s32.totalorder %s20, 1
      %s234 = scalar_select %p233, %s20, 1
      %p235 = scmp.lt.s32.totalorder %s21, 1
      %s236 = scalar_select %p235, %s21, 1
      %s237 = smul.addr %s234, 2
      %s238 = sadd.s32 %s236, %s237
      %s239 = smul.addr %s238, 8
      %s240 = scalar_lea.vmem %s4, %s239
      %p241 = scmp.lt.s32.totalorder %s20, 1
      %s242 = scalar_select %p241, %s20, 1
      %p243 = scmp.lt.s32.totalorder %s21, 1
      %s244 = scalar_select %p243, %s21, 1
      %s245 = smul.addr %s244, 32
      %s246 = smul.addr %s242, 64
      %s247 = sadd.s32 %s245, %s246
      %s248 = smul.addr %s247, 4
      %s249 = scalar_lea.vmem %s0, %s248
      %s250 = smul.u32 2, %s21
      %p251 = scmp.lt.s32.totalorder %s20, 1
      %s252 = scalar_select %p251, %s20, 1
      %p253 = scmp.lt.s32.totalorder %s250, 3
      %s254 = scalar_select %p253, %s250, 3
      %s255 = smul.addr %s252, 4
      %s256 = sadd.s32 %s254, %s255
      %s257 = smul.addr %s256, 8
      %s258 = scalar_lea.vmem %s2, %s257
      %s259 = smul.u32 2, %s21
      %p260 = scmp.lt.s32.totalorder %s20, 1
      %s261 = scalar_select %p260, %s20, 1
      %p262 = scmp.lt.s32.totalorder %s21, 1
      %s263 = scalar_select %p262, %s21, 1
      %s264 = smul.addr %s261, 2
      %s265 = sadd.s32 %s263, %s264
      %s266 = smul.addr %s265, 8
      %s267 = scalar_lea.vmem %s3, %s266
      %p268 = scmp.lt.s32.totalorder %s20, 1
      %s269 = scalar_select %p268, %s20, 1
      %p270 = scmp.lt.s32.totalorder %s21, 1
      %s271 = scalar_select %p270, %s21, 1
      %s272 = smul.addr %s269, 2
      %s273 = sadd.s32 %s271, %s272
      %s274 = smul.addr %s273, 8
      %s275 = scalar_lea.vmem %s4, %s274
      %v276 = vld [vmem:[%s249] sm:$0xff]
      %v277 = vld [vmem:[%s249 + $0x8] sm:$0xff]
      %v278 = vld [vmem:[%s249 + $0x10] sm:$0xff]
      %v279 = vld [vmem:[%s249 + $0x18] sm:$0xff]
      %v280 = vld [vmem:[%s249 + $0x20] sm:$0xff]
      %v281 = vld [vmem:[%s249 + $0x28] sm:$0xff]
      %v282 = vld [vmem:[%s249 + $0x30] sm:$0xff]
      %v283 = vld [vmem:[%s249 + $0x38] sm:$0xff]
      %v284 = vld [vmem:[%s249 + $0x40] sm:$0xff]
      %v285 = vld [vmem:[%s249 + $0x48] sm:$0xff]
      %v286 = vld [vmem:[%s249 + $0x50] sm:$0xff]
      %v287 = vld [vmem:[%s249 + $0x58] sm:$0xff]
      %v288 = vld [vmem:[%s249 + $0x60] sm:$0xff]
      %v289 = vld [vmem:[%s249 + $0x68] sm:$0xff]
      %v290 = vld [vmem:[%s249 + $0x70] sm:$0xff]
      %v291 = vld [vmem:[%s249 + $0x78] sm:$0xff]
      %v292 = vld [vmem:[%s1] sm:$0xf]
      %v309 = vunpack.c.l.b16 %v276
      %v310 = vunpack.c.h.b16 %v276
      %v311 = vunpack.c.l.b16 %v277
      %v312 = vunpack.c.h.b16 %v277
      %v313 = vunpack.c.l.b16 %v278
      %v314 = vunpack.c.h.b16 %v278
      %v315 = vunpack.c.l.b16 %v279
      %v316 = vunpack.c.h.b16 %v279
      %v317 = vunpack.c.l.b16 %v280
      %v318 = vunpack.c.h.b16 %v280
      %v319 = vunpack.c.l.b16 %v281
      %v320 = vunpack.c.h.b16 %v281
      %v321 = vunpack.c.l.b16 %v282
      %v322 = vunpack.c.h.b16 %v282
      %v323 = vunpack.c.l.b16 %v283
      %v324 = vunpack.c.h.b16 %v283
      %v325 = vunpack.c.l.b16 %v284
      %v326 = vunpack.c.h.b16 %v284
      %v327 = vunpack.c.l.b16 %v285
      %v328 = vunpack.c.h.b16 %v285
      %v329 = vunpack.c.l.b16 %v286
      %v330 = vunpack.c.h.b16 %v286
      %v331 = vunpack.c.l.b16 %v287
      %v332 = vunpack.c.h.b16 %v287
      %v333 = vunpack.c.l.b16 %v288
      %v334 = vunpack.c.h.b16 %v288
      %v335 = vunpack.c.l.b16 %v289
      %v336 = vunpack.c.h.b16 %v289
      %v337 = vunpack.c.l.b16 %v290
      %v338 = vunpack.c.h.b16 %v290
      %v339 = vunpack.c.l.b16 %v291
      %v340 = vunpack.c.h.b16 %v291
      %v341 = vpack.c.b16 %v311, %v309
      %v342 = vpack.c.b16 %v312, %v310
      %v343 = vpack.c.b16 %v315, %v313
      %v344 = vpack.c.b16 %v316, %v314
      %v345 = vpack.c.b16 %v319, %v317
      %v346 = vpack.c.b16 %v320, %v318
      %v347 = vpack.c.b16 %v323, %v321
      %v348 = vpack.c.b16 %v324, %v322
      %v349 = vpack.c.b16 %v327, %v325
      %v350 = vpack.c.b16 %v328, %v326
      %v351 = vpack.c.b16 %v331, %v329
      %v352 = vpack.c.b16 %v332, %v330
      %v353 = vpack.c.b16 %v335, %v333
      %v354 = vpack.c.b16 %v336, %v334
      %v355 = vpack.c.b16 %v339, %v337
      %v356 = vpack.c.b16 %v340, %v338
      %373 = vmatpush.bf16.msra.mxu0 %v355
      %374 = vmatpush.bf16.msra.mxu0 %v353
      %375 = vmatpush.bf16.msra.mxu0 %v351
      %376 = vmatpush.bf16.msra.mxu0 %v349
      %377 = vmatpush.bf16.msra.mxu0 %v347
      %378 = vmatpush.bf16.msra.mxu0 %v345
      %379 = vmatpush.bf16.msra.mxu0 %v343
      %380 = vmatpush.bf16.msra.mxu0 %v341
      %381 = vmatmul.bf16.gmra.mxu0 %v292
      %v382 = vpop.f32.mrf.mxu0
      %v383 = vadd.f32 0.0, %v382
      %v384 = vpop.f32.mrf.mxu0
      %385 = vdwg.mxu0
      %386 = vmatpush.bf16.msra.mxu0 %v356
      %387 = vmatpush.bf16.msra.mxu0 %v354
      %388 = vmatpush.bf16.msra.mxu0 %v352
      %389 = vmatpush.bf16.msra.mxu0 %v350
      %390 = vmatpush.bf16.msra.mxu0 %v348
      %391 = vmatpush.bf16.msra.mxu0 %v346
      %392 = vmatpush.bf16.msra.mxu0 %v344
      %393 = vmatpush.bf16.msra.mxu0 %v342
      %394 = vmatmul.bf16.gmra.mxu0 %v292
      %v395 = vpop.f32.mrf.mxu0
      %v396 = vadd.f32 0.0, %v395
      %v397 = vpop.f32.mrf.mxu0
      %398 = vdwg.mxu0
      %399 = vst [vmem:[%s258] sm:$0xff] %v383
      %400 = vst [vmem:[%s258 + $0x8] sm:$0xff] %v396
      %v401 = vadd.f32 %v383, %v396
      %402 = vadd.xlane.f32.xlu0 %v401
      %v403 = vpop.xlane.xlu0 %402
      %vm404 = vcmask 7168
      %405 = vst.msk [vmem:[%s267] sm:$0xff] %vm404, %v403
      %v406 = vmul.f32 %v383, %v383
      %v407 = vmul.f32 %v396, %v396
      %v408 = vadd.f32 %v406, %v407
      %409 = vadd.xlane.f32.xlu0 %v408
      %v410 = vpop.xlane.xlu0 %409
      %411 = vst.msk [vmem:[%s275] sm:$0xff] %vm404, %v410
      %s412 = smul.u32 2, %s21
      %p413 = scmp.lt.s32.totalorder %s20, 1
      %s414 = scalar_select %p413, %s20, 1
      %p415 = scmp.lt.s32.totalorder %s412, 3
      %s416 = scalar_select %p415, %s412, 3
      %s417 = smul.addr %s414, 4
      %s418 = sadd.s32 %s416, %s417
      %s419 = smul.addr %s418, 8
      %s420 = scalar_lea.vmem %s2, %s419
      %p421 = scmp.lt.s32.totalorder %s20, 1
      %s422 = scalar_select %p421, %s20, 1
      %p423 = scmp.lt.s32.totalorder %s21, 1
      %s424 = scalar_select %p423, %s21, 1
      %s425 = smul.addr %s422, 2
      %s426 = sadd.s32 %s424, %s425
      %s427 = smul.addr %s426, 8
      %s428 = scalar_lea.vmem %s3, %s427
      %p429 = scmp.lt.s32.totalorder %s20, 1
      %s430 = scalar_select %p429, %s20, 1
      %p431 = scmp.lt.s32.totalorder %s21, 1
      %s432 = scalar_select %p431, %s21, 1
      %s433 = smul.addr %s430, 2
      %s434 = sadd.s32 %s432, %s433
      %s435 = smul.addr %s434, 8
      %s436 = scalar_lea.vmem %s4, %s435
      // Predicated region
      $region29: #{convolution_forward.2} parent=27 // pred_check
        %p437 = pneg %p97
      $region30: #{convolution_forward.2} parent=27 // pred_check_branch
        %439 = sbr.rel (%p437) target = $region32
      $region31: #{convolution_forward.2} parent=27 // pred_region
        %s440 = smul.u32 2, %s21
      $region32: #{convolution_forward.2} parent=27 // pred_fallthru
        _
      // Predicated region
      $region33: #{convolution_forward.2} parent=27 // pred_check
        %p441 = pneg %p125
      $region34: #{convolution_forward.2} parent=27 // pred_check_branch
        %443 = sbr.rel (%p441) target = $region36
      $region35: #{convolution_forward.2} parent=27 // pred_region
        _
      $region36: #{convolution_forward.2} parent=27 // pred_fallthru
        _
      // Predicated region
      $region37: #{convolution_forward.2} parent=27 // pred_check
        %p444 = pneg %p153
      $region38: #{convolution_forward.2} parent=27 // pred_check_branch
        %446 = sbr.rel (%p444) target = $region40
      $region39: #{convolution_forward.2} parent=27 // pred_region
        _
      $region40: #{convolution_forward.2} parent=27 // pred_fallthru
        _
    $region28: #{convolution_forward.2} parent=5 // pred_fallthru
      _
    %p447 = scmp.le.s32.totalorder 2, %s11
    // Predicated region
    $region41: #{convolution_forward.2} parent=5 // pred_check
      %p448 = pneg %p447
    $region42: #{convolution_forward.2} parent=5 // pred_check_branch
      %450 = sbr.rel (%p448) target = $region44
    $region43: #{convolution_forward.2} parent=5 // pred_region
      %s451 = ssub.s32 %s11, 2
      // Predicated region
      $region45: #{convolution_forward.2} parent=43 // pred_check
        %p452 = pneg %p103
      $region46: #{convolution_forward.2} parent=43 // pred_check_branch
        %454 = sbr.rel (%p452) target = $region48
      $region47: #{convolution_forward.2} parent=43 // pred_region
        %s455 = smul.u32 2, %s23
        %p456 = scmp.lt.s32.totalorder %s22, 1
        %s457 = scalar_select %p456, %s22, 1
        %p458 = scmp.lt.s32.totalorder %s455, 3
        %s459 = scalar_select %p458, %s455, 3
        %s460 = smul.addr %s457, 4
        %s461 = sadd.s32 %s459, %s460
        %s462 = smul.addr %s461, 8
        %s463 = scalar_lea.vmem %s2, %s462
      $region48: #{convolution_forward.2} parent=43 // pred_fallthru
        _
      // Predicated region
      $region49: #{convolution_forward.2} parent=43 // pred_check
        %p464 = pneg %p131
      $region50: #{convolution_forward.2} parent=43 // pred_check_branch
        %466 = sbr.rel (%p464) target = $region52
      $region51: #{convolution_forward.2} parent=43 // pred_region
        %p467 = scmp.lt.s32.totalorder %s22, 1
        %s468 = scalar_select %p467, %s22, 1
        %p469 = scmp.lt.s32.totalorder %s23, 1
        %s470 = scalar_select %p469, %s23, 1
        %s471 = smul.addr %s468, 2
        %s472 = sadd.s32 %s470, %s471
        %s473 = smul.addr %s472, 8
        %s474 = scalar_lea.vmem %s3, %s473
      $region52: #{convolution_forward.2} parent=43 // pred_fallthru
        _
      // Predicated region
      $region53: #{convolution_forward.2} parent=43 // pred_check
        %p475 = pneg %p159
      $region54: #{convolution_forward.2} parent=43 // pred_check_branch
        %477 = sbr.rel (%p475) target = $region56
      $region55: #{convolution_forward.2} parent=43 // pred_region
        %p478 = scmp.lt.s32.totalorder %s22, 1
        %s479 = scalar_select %p478, %s22, 1
        %p480 = scmp.lt.s32.totalorder %s23, 1
        %s481 = scalar_select %p480, %s23, 1
        %s482 = smul.addr %s479, 2
        %s483 = sadd.s32 %s481, %s482
        %s484 = smul.addr %s483, 8
        %s485 = scalar_lea.vmem %s4, %s484
      $region56: #{convolution_forward.2} parent=43 // pred_fallthru
        _
    $region44: #{convolution_forward.2} parent=5 // pred_fallthru
      _
  $region6: #{convolution_forward.2} parent=0 // loop_footer
    %s15 = sadd.s32 1, %s11
  $region7: #{convolution_forward.2} parent=0 // loop_footer_branch
    %10 = sbr.rel target = $region3
  $region8: #{convolution_forward.2} parent=0 // loop_exit
    _

</llo_original>
